<compile_context>
chip_gen: v5e
topology: v5e:2x2
jax: 0.10.0
libtpu: 0.0.40
codegen_flags: <defaults>
</compile_context>

<pallas_src>
import functools

import jax
import jax.numpy as jnp
from jax import lax
from jax.experimental import pallas as pl
from jax.experimental.pallas import tpu as pltpu


def _round_up(x, m):
    return ((x + m - 1) // m) * m


def _largest_divisor(n, limit):
    limit = max(1, min(n, limit))
    for d in range(limit, 0, -1):
        if n % d == 0:
            return d
    return 1


def _freq_loss_kernel(g_ref, x_ref, o_ref, v_ref, *, inv_n2):
    # g_ref: (TB, 1, TN)   ground-truth rows for this block (lane-dense)
    # x_ref: (TB, TN, K)   target rows for this block
    # o_ref: (TB, 1, 1)    per-sample loss (output-resident across the row-tile axis)
    # v_ref: (TB, 1, K)    running v_b = gt_b @ target_b   (f32 VMEM scratch)
    t = pl.program_id(1)

    @pl.when(t == 0)
    def _():
        v_ref[...] = jnp.zeros_like(v_ref)

    # Batched (1, TN) @ (TN, K) on the (otherwise idle) MXU, accumulated in f32.
    v_ref[...] += jnp.einsum(
        "bqn,bnk->bqk",
        g_ref[...],
        x_ref[...],
        preferred_element_type=jnp.float32,
        precision=lax.Precision.HIGHEST,
    )

    @pl.when(t == pl.num_programs(1) - 1)
    def _():
        v = v_ref[...]                                               # (TB, 1, K)
        per_sample = jnp.sum(v * v, axis=-1, keepdims=True) * inv_n2  # (TB, 1, 1)
        o_ref[...] = per_sample.astype(o_ref.dtype)


def frequency_loss(target, ground_truth, *, tb=None, tn=None):
    """Pallas implementation of Frequency_loss.forward(target, ground_truth)."""
    B, N, K = target.shape
    assert ground_truth.shape == (B, N), (target.shape, ground_truth.shape)
    if ground_truth.dtype != target.dtype:
        ground_truth = ground_truth.astype(target.dtype)

    itemsize = jnp.dtype(target.dtype).itemsize
    sub_align = {4: 8, 2: 16, 1: 32}.get(itemsize, 8)   # native sublane tiling per dtype
    lane = 128

    # --- tile selection -------------------------------------------------------
    # Budget ~8 MiB of streamed (HBM) target data per grid step, but cap the
    # *VMEM* footprint of one target buffer (K is padded to 128 lanes) at ~12 MiB
    # so the double-buffered pipeline fits every generation's scoped VMEM.
    row_hbm = max(1, K * itemsize)
    row_vmem = max(1, _round_up(K, lane) * itemsize)
    HBM_TILE_BUDGET = 8 << 20
    VMEM_TILE_BUDGET = 12 << 20
    max_rows = max(1, min(HBM_TILE_BUDGET // row_hbm, VMEM_TILE_BUDGET // row_vmem))

    if tn is None:
        if N <= max_rows:
            tn = N                                     # whole-extent row block
        else:
            tn = max(lane, (max_rows // lane) * lane)  # lane-aligned row tile
    n_pad = _round_up(N, tn)
    # Block-shape legality: gt's last dim is tn (needs %128 or full extent);
    # target's second-to-last is tn (needs sublane alignment or full extent).
    if not (tn == n_pad or (tn % lane == 0)):
        raise ValueError(f"tn={tn} must be a multiple of 128 or cover all rows")

    if tb is None:
        cap_rows = max(1, max_rows // max(tn, 1))            # budget-based fold
        cap_par = max(1, B // 4) if B >= 4 else 1            # keep >=4 (or B) batch blocks
        tb = _largest_divisor(B, min(cap_rows, cap_par))
    assert B % tb == 0, (B, tb)

    # --- padding for awkward N (zero rows contribute nothing to gt @ T) --------
    if n_pad != N:
        target = jnp.pad(target, ((0, 0), (0, n_pad - N), (0, 0)))
        ground_truth = jnp.pad(ground_truth, ((0, 0), (0, n_pad - N)))
    gt3 = ground_truth.reshape(B, 1, n_pad)     # lane-dense gt layout (free reshape)

    inv_n2 = 1.0 / float(N * N)                 # normalization uses the ORIGINAL N

    # --- VMEM limit covering the double-buffered pipeline ----------------------
    gt_tile = tb * sub_align * _round_up(tn, lane) * itemsize
    x_tile = tb * _round_up(tn, sub_align) * _round_up(K, lane) * itemsize
    v_tile = tb * 8 * _round_up(K, lane) * 4
    o_tile = tb * 8 * lane * 4
    vmem_limit = int(min(2 * (gt_tile + x_tile) + v_tile + 2 * o_tile + (4 << 20),
                         48 << 20))

    cost = pl.CostEstimate(
        flops=2 * B * N * K + 3 * B * K,
        transcendentals=0,
        bytes_accessed=B * N * K * itemsize + B * N * itemsize + B * 4,
    )

    kernel = functools.partial(_freq_loss_kernel, inv_n2=inv_n2)

    per_sample = pl.pallas_call(
        kernel,
        out_shape=jax.ShapeDtypeStruct((B, 1, 1), jnp.float32),
        grid_spec=pltpu.PrefetchScalarGridSpec(
            num_scalar_prefetch=0,
            grid=(B // tb, n_pad // tn),
            in_specs=[
                pl.BlockSpec((tb, 1, tn), lambda b, t: (b, 0, t)),
                pl.BlockSpec((tb, tn, K), lambda b, t: (b, t, 0)),
            ],
            out_specs=pl.BlockSpec((tb, 1, 1), lambda b, t: (b, 0, 0)),
            scratch_shapes=[pltpu.VMEM((tb, 1, K), jnp.float32)],
        ),
        compiler_params=pltpu.CompilerParams(
            dimension_semantics=("parallel", "arbitrary"),
            vmem_limit_bytes=vmem_limit,
        ),
        cost_estimate=cost,
    )(gt3, target)

    # The mean over the N*N "frequency block" elements was applied in-kernel
    # (the * 1/N^2); the final mean over the batch is a trivial scalar reduction.
    return jnp.mean(per_sample[:, 0, 0])


def _reference(target, ground_truth):
    # Pure-JAX transcription of the PyTorch forward (materializes the N x N blocks).
    hi = lax.Precision.HIGHEST
    gt_outer = jnp.einsum("bi,bj->bij", ground_truth, ground_truth, precision=hi)
    gram = jnp.einsum("bik,bjk->bij", target, target, precision=hi)
    comparison = gt_outer * gram
    B = comparison.shape[0]
    return comparison.reshape(B, -1).mean(axis=1).mean()


if __name__ == "__main__":
    key = jax.random.PRNGKey(0)
    k1, k2, k3, k4 = jax.random.split(key, 4)

    # 1) Small, friendly shapes: auto path (whole-N row block, parallel batch axis).
    B, N, K = 4, 32, 32
    target = jax.random.normal(k1, (B, N, K), dtype=jnp.float32)
    ground_truth = jax.random.normal(k2, (B, N), dtype=jnp.float32)
    ref = _reference(target, ground_truth)
    loss = jax.block_until_ready(frequency_loss(target, ground_truth))
    assert jnp.allclose(loss, ref, rtol=5e-3, atol=1e-5), (loss, ref)

    # 2) Awkward N: exercises zero-padded row tiles, the multi-step reduction axis,
    #    and multiple batch blocks on the "parallel" axis.
    B2, N2, K2 = 4, 260, 32
    target2 = jax.random.normal(k3, (B2, N2, K2), dtype=jnp.float32)
    ground_truth2 = jax.random.normal(k4, (B2, N2), dtype=jnp.float32)
    ref2 = _reference(target2, ground_truth2)
    loss2 = jax.block_until_ready(frequency_loss(target2, ground_truth2, tb=2, tn=128))
    assert jnp.allclose(loss2, ref2, rtol=5e-3, atol=1e-5), (loss2, ref2)

    print("KERNEL_OK")
</pallas_src>

<mosaic_0001>
module attributes {stable_mosaic.version = 11 : i64} {
  func.func @_freq_loss_kernel(%arg0: i32, %arg1: i32, %arg2: memref<1x1x32xf32, #tpu.memory_space<vmem>>, %arg3: memref<1x32x32xf32, #tpu.memory_space<vmem>>, %arg4: memref<1x1x1xf32, #tpu.memory_space<vmem>>, %arg5: memref<1x1x32xf32, #tpu.memory_space<vmem>>) attributes {dimension_semantics = [#tpu.dimension_semantics<parallel>, #tpu.dimension_semantics<arbitrary>], iteration_bounds = array<i64: 4, 1>, scalar_prefetch = 0 : i64, scratch_operands = 1 : i64, tpu.core_type = #tpu.core_type<tc>, window_params = [{transform_indices = @transform_0, window_bounds = array<i64: 1, 1, 32>}, {transform_indices = @transform_1, window_bounds = array<i64: 1, 32, 32>}, {transform_indices = @transform_2, window_bounds = array<i64: 1, 1, 1>}]} {
    %c0_i32 = arith.constant 0 : i32
    %0 = arith.cmpi eq, %arg1, %c0_i32 : i32
    %1 = arith.extui %0 : i1 to i32
    %c0_i32_0 = arith.constant 0 : i32
    %2 = arith.cmpi ne, %1, %c0_i32_0 : i32
    scf.if %2 {
      %cst_14 = arith.constant 0.000000e+00 : f32
      %12 = vector.broadcast %cst_14 : f32 to vector<1x1x32xf32>
      %c0_15 = arith.constant 0 : index
      %c0_16 = arith.constant 0 : index
      %c0_17 = arith.constant 0 : index
      %13 = vector.load %arg5[%c0_15, %c0_16, %c0_17] : memref<1x1x32xf32, #tpu.memory_space<vmem>>, vector<1x1x32xf32>
      tpu.vector_store %arg5[%c0_15, %c0_16, %c0_17], %12 {strides = array<i32>} : memref<1x1x32xf32, #tpu.memory_space<vmem>>, vector<1x1x32xf32>,
    } else {
    }
    %c0 = arith.constant 0 : index
    %c0_1 = arith.constant 0 : index
    %c0_2 = arith.constant 0 : index
    %3 = vector.load %arg5[%c0, %c0_1, %c0_2] : memref<1x1x32xf32, #tpu.memory_space<vmem>>, vector<1x1x32xf32>
    %c0_3 = arith.constant 0 : index
    %c0_4 = arith.constant 0 : index
    %c0_5 = arith.constant 0 : index
    %4 = vector.load %arg2[%c0_3, %c0_4, %c0_5] : memref<1x1x32xf32, #tpu.memory_space<vmem>>, vector<1x1x32xf32>
    %c0_6 = arith.constant 0 : index
    %c0_7 = arith.constant 0 : index
    %c0_8 = arith.constant 0 : index
    %5 = vector.load %arg3[%c0_6, %c0_7, %c0_8] : memref<1x32x32xf32, #tpu.memory_space<vmem>>, vector<1x32x32xf32>
    "tpu.trace_start"() <{level = 10 : i32, message = "bqn,bnk->bqk"}> : () -> ()
    %cst = arith.constant dense<0.000000e+00> : vector<1x1x32xf32>
    %6 = tpu.matmul %4, %5, %cst {dimension_numbers = #tpu.dot_dimension_numbers<[2], [1], [1], [2], [0, 0, 0, 1, 1, 2], [0], [0]>, precision = #tpu.contract_precision<fp32>} : vector<1x1x32xf32>, vector<1x32x32xf32>, vector<1x1x32xf32> -> vector<1x1x32xf32>
    "tpu.trace_stop"() : () -> ()
    %7 = arith.addf %3, %6 : vector<1x1x32xf32>
    %c0_9 = arith.constant 0 : index
    %c0_10 = arith.constant 0 : index
    %c0_11 = arith.constant 0 : index
    %8 = vector.load %arg5[%c0_9, %c0_10, %c0_11] : memref<1x1x32xf32, #tpu.memory_space<vmem>>, vector<1x1x32xf32>
    tpu.vector_store %arg5[%c0_9, %c0_10, %c0_11], %7 {strides = array<i32>} : memref<1x1x32xf32, #tpu.memory_space<vmem>>, vector<1x1x32xf32>,
    %c0_i32_12 = arith.constant 0 : i32
    %9 = arith.cmpi eq, %arg1, %c0_i32_12 : i32
    %10 = arith.extui %9 : i1 to i32
    %c0_i32_13 = arith.constant 0 : i32
    %11 = arith.cmpi ne, %10, %c0_i32_13 : i32
    scf.if %11 {
      %c0_14 = arith.constant 0 : index
      %c0_15 = arith.constant 0 : index
      %c0_16 = arith.constant 0 : index
      %12 = vector.load %arg5[%c0_14, %c0_15, %c0_16] : memref<1x1x32xf32, #tpu.memory_space<vmem>>, vector<1x1x32xf32>
      %13 = arith.mulf %12, %12 : vector<1x1x32xf32>
      %cst_17 = arith.constant dense<0.000000e+00> : vector<1x1xf32>
      %14 = vector.multi_reduction <add>, %13, %cst_17 [2] : vector<1x1x32xf32> to vector<1x1xf32>
      %15 = vector.shape_cast %14 : vector<1x1xf32> to vector<1x1x1xf32>
      %cst_18 = arith.constant 9.765625E-4 : f32
      %16 = vector.broadcast %cst_18 : f32 to vector<1x1x1xf32>
      %17 = arith.mulf %15, %16 : vector<1x1x1xf32>
      %c0_19 = arith.constant 0 : index
      %c0_20 = arith.constant 0 : index
      %c0_21 = arith.constant 0 : index
      %18 = vector.load %arg4[%c0_19, %c0_20, %c0_21] : memref<1x1x1xf32, #tpu.memory_space<vmem>>, vector<1x1x1xf32>
      tpu.vector_store %arg4[%c0_19, %c0_20, %c0_21], %17 {strides = array<i32>} : memref<1x1x1xf32, #tpu.memory_space<vmem>>, vector<1x1x1xf32>,
    } else {
    }
    return
  }
  func.func @transform_0(%arg0: i32, %arg1: i32) -> (i32, i32, i32) {
    %c0_i32 = arith.constant 0 : i32
    %c0_i32_0 = arith.constant 0 : i32
    return %arg0, %c0_i32, %arg1 : i32, i32, i32
  }
  func.func @transform_1(%arg0: i32, %arg1: i32) -> (i32, i32, i32) {
    %c0_i32 = arith.constant 0 : i32
    %c0_i32_0 = arith.constant 0 : i32
    return %arg0, %arg1, %c0_i32 : i32, i32, i32
  }
  func.func @transform_2(%arg0: i32, %arg1: i32) -> (i32, i32, i32) {
    %c0_i32 = arith.constant 0 : i32
    %c0_i32_0 = arith.constant 0 : i32
    %c0_i32_1 = arith.constant 0 : i32
    return %arg0, %c0_i32, %c0_i32_0 : i32, i32, i32
  }
}

</mosaic_0001>

<llo_original>
// kernel: tpu_custom_call.1
$region0: #{tpu_custom_call.1}
  #allocation0 [shape = 'u32[]', space=smem, size = 0x4, offset = 0x4, fixed_abs, tag = 'smem constant byte address 0x4 - core index']
  #allocation1 [shape = 'u32[72,128]{1,0:T(1,128)}', space=vmem, size = 0x9000, scoped, tag = 'internal scratch']
  #allocation2 [shape = 'f32[1,1,32]{2,1,0:T(1,128)}', space=vmem, size = 0x200, scoped, tag = 'scratch operand']
  %s0 = inlined_call_operand.hbm [shape: f32[4,1,32], index: 0, kind: input, shape index: {}]
  %s1 = inlined_call_operand.hbm [shape: f32[4,32,32], index: 1, kind: input, shape index: {}]
  %s2 = inlined_call_operand.vmem [shape: f32[4,1,1], index: 2, kind: output, shape index: {}]
  %s3 = sld [smem:[#allocation0]]
  $region57: #{tpu_custom_call.1} parent=0
    _
  %s5 = ssub.s32 1, %s3
  %s6 = scalar_select 0, %s5, %s3
  $region1: #{tpu_custom_call.1} parent=0
    #allocation3 [shape = 'u8[1024]{0}', space=vmem, size = 0x400, scoped, tag = 'input window, operand 0']
    #allocation4 [shape = 's32[2]{0}', space=sflag, size = 0x8, scoped, tag = 'scoped memory for tpu_custom_call.1']
    #allocation5 [shape = 'u8[32768]{0}', space=vmem, size = 0x8000, scoped, tag = 'input window, operand 1']
    #allocation6 [shape = 's32[2]{0}', space=sflag, size = 0x8, scoped, tag = 'scoped memory for tpu_custom_call.1']
    %7 = vsyncpa [#allocation4], 0
    %s8 = scalar_lea.sflag [#allocation4], 1
    %9 = vsyncpa %s8, 0
    %10 = vsyncpa [#allocation6], 0
    %s11 = scalar_lea.sflag [#allocation6], 1
    %12 = vsyncpa %s11, 0
    loop: start=0, step=1, limit=6
    $region2: #{tpu_custom_call.1} parent=1 // loop_pre_header
      _
    $region3: #{tpu_custom_call.1} parent=1 // loop_header
      %s14 = sphi 0, %s18
      %p15 = scmp.ge.s32.totalorder %s14, 6
      %s21 = sphi 0, %s33
      %s22 = sphi 0, %s29
      %s23 = sphi 0, %s21
      %s24 = sphi 0, %s22
      %s25 = sphi 0, %s23
      %s26 = sphi 0, %s24
      %s38 = sphi 0, %s40
      %s41 = sphi 0, %s38
      %s42 = sphi 0, %s41
      %s58 = sphi 0, %s42
      %s66 = sphi 0, %s68
      %s69 = sphi 0, %s66
      %s70 = sphi 0, %s69
      %s86 = sphi 0, %s70
      %s92 = sphi 0, %s94
      %s95 = sphi 0, %s92
      %s96 = sphi 0, %s95
      %s112 = sphi 0, %s96
    $region4: #{tpu_custom_call.1} parent=1 // loop_header_branch
      %17 = sbr.rel (%p15) target = $region8
    $region5: #{tpu_custom_call.1} parent=1 // loop_body
      %s19 = ssub.s32 %s14, 1
      %s20 = ssub.s32 %s14, 2
      %s27 = sadd.s32 1, %s22
      %p28 = scmp.ge.s32.totalorder %s27, 1
      %s29 = scalar_select %p28, 0, %s27
      %s30 = sadd.s32 1, %s21
      %s31 = scalar_select %p28, %s30, %s21
      %p32 = scmp.ge.s32.totalorder %s31, 4
      %s33 = scalar_select %p32, 0, %s31
      %s34 = ssub.s32 %s21, %s33
      %s35 = ssub.s32 %s22, %s29
      %s36 = sor.u32 %s34, %s35
      %p37 = scmp.eq.s32.totalorder %s36, 0
      %s39 = sadd.s32 %s38, 1
      %s40 = scalar_select %p37, %s38, %s39
      %p43 = pneg %p37
      %p44 = scmp.eq.s32.totalorder %s14, 3
      %p45 = por %p43, %p44
      %p46 = scmp.ne.s32.totalorder %s38, %s41
      %p47 = scmp.eq.s32.totalorder %s14, 0
      %p48 = por %p46, %p47
      %p49 = scmp.ne.s32.totalorder %s38, %s41
      %p50 = scmp.eq.s32.totalorder %s19, 3
      %p51 = por %p49, %p50
      %p52 = scmp.ne.s32.totalorder %s41, %s42
      %p53 = scmp.eq.s32.totalorder %s19, 0
      %p54 = por %p52, %p53
      %p55 = scmp.ne.s32.totalorder %s41, %s42
      %p56 = scmp.eq.s32.totalorder %s20, 3
      %p57 = por %p55, %p56
      %p59 = scmp.ne.s32.totalorder %s42, %s58
      %p60 = scmp.eq.s32.totalorder %s20, 0
      %p61 = por %p59, %p60
      %s62 = ssub.s32 %s21, %s33
      %s63 = ssub.s32 %s22, %s29
      %s64 = sor.u32 %s62, %s63
      %p65 = scmp.eq.s32.totalorder %s64, 0
      %s67 = sadd.s32 %s66, 1
      %s68 = scalar_select %p65, %s66, %s67
      %p71 = pneg %p65
      %p72 = scmp.eq.s32.totalorder %s14, 3
      %p73 = por %p71, %p72
      %p74 = scmp.ne.s32.totalorder %s66, %s69
      %p75 = scmp.eq.s32.totalorder %s14, 0
      %p76 = por %p74, %p75
      %p77 = scmp.ne.s32.totalorder %s66, %s69
      %p78 = scmp.eq.s32.totalorder %s19, 3
      %p79 = por %p77, %p78
      %p80 = scmp.ne.s32.totalorder %s69, %s70
      %p81 = scmp.eq.s32.totalorder %s19, 0
      %p82 = por %p80, %p81
      %p83 = scmp.ne.s32.totalorder %s69, %s70
      %p84 = scmp.eq.s32.totalorder %s20, 3
      %p85 = por %p83, %p84
      %p87 = scmp.ne.s32.totalorder %s70, %s86
      %p88 = scmp.eq.s32.totalorder %s20, 0
      %p89 = por %p87, %p88
      %s90 = ssub.s32 %s21, %s33
      %p91 = scmp.eq.s32.totalorder %s90, 0
      %s93 = sadd.s32 %s92, 1
      %s94 = scalar_select %p91, %s92, %s93
      %p97 = pneg %p91
      %p98 = scmp.eq.s32.totalorder %s14, 3
      %p99 = por %p97, %p98
      %p100 = scmp.ne.s32.totalorder %s92, %s95
      %p101 = scmp.eq.s32.totalorder %s14, 0
      %p102 = por %p100, %p101
      %p103 = scmp.ne.s32.totalorder %s92, %s95
      %p104 = scmp.eq.s32.totalorder %s19, 3
      %p105 = por %p103, %p104
      %p106 = scmp.ne.s32.totalorder %s95, %s96
      %p107 = scmp.eq.s32.totalorder %s19, 0
      %p108 = por %p106, %p107
      %p109 = scmp.ne.s32.totalorder %s95, %s96
      %p110 = scmp.eq.s32.totalorder %s20, 3
      %p111 = por %p109, %p110
      %p113 = scmp.ne.s32.totalorder %s96, %s112
      %p114 = scmp.eq.s32.totalorder %s20, 0
      %p115 = por %p113, %p114
      %p116 = scmp.le.s32.totalorder 1, %s14
      %p117 = scmp.lt.s32.totalorder %s14, 5
      %p118 = pnand %p116, %p117
      %p119 = pneg %p118
      // Predicated region
      $region9: #{tpu_custom_call.1} parent=5 // pred_check
        _
      $region10: #{tpu_custom_call.1} parent=5 // pred_check_branch
        %121 = sbr.rel (%p118) target = $region12
      $region11: #{tpu_custom_call.1} parent=5 // pred_region
        %s122 = ssub.s32 %s14, 1
      $region12: #{tpu_custom_call.1} parent=5 // pred_fallthru
        _
      %p123 = scmp.lt.s32.totalorder %s14, 4
      // Predicated region
      $region13: #{tpu_custom_call.1} parent=5 // pred_check
        %p124 = pneg %p123
      $region14: #{tpu_custom_call.1} parent=5 // pred_check_branch
        %126 = sbr.rel (%p124) target = $region16
      $region15: #{tpu_custom_call.1} parent=5 // pred_region
        // Predicated region
        $region17: #{tpu_custom_call.1} parent=15 // pred_check
          %p127 = pneg %p48
        $region18: #{tpu_custom_call.1} parent=15 // pred_check_branch
          %129 = sbr.rel (%p127) target = $region20
        $region19: #{tpu_custom_call.1} parent=15 // pred_region
          %s130 = sand.u32 %s38, 1
          %s131 = scalar_lea.sflag [#allocation4], %s130
          %s132 = sand.u32 %s38, 1
          %s133 = scalar_lea.vmem [#allocation3], %s132
          %135 = vsyncadd %s131, 0
          %s136 = sadd.s32 %s22, %s21
          %s137 = scalar_lea.hbm %s0, %s136
          %s139 = sshll.u32 %s137, 4
          %s140 = int_to_ptr.hbm [resolvable:$true] %s139
          %s141 = sshll.u32 %s133, 4
          %s142 = int_to_ptr.vmem [resolvable:$true] %s141
          %144 = dma.hbm_to_vmem [thread:$0]  %s140, 16, %s142, %s131
        $region20: #{tpu_custom_call.1} parent=15 // pred_fallthru
          _
        // Predicated region
        $region21: #{tpu_custom_call.1} parent=15 // pred_check
          %p145 = pneg %p76
        $region22: #{tpu_custom_call.1} parent=15 // pred_check_branch
          %147 = sbr.rel (%p145) target = $region24
        $region23: #{tpu_custom_call.1} parent=15 // pred_region
          %s148 = sand.u32 %s66, 1
          %s149 = scalar_lea.sflag [#allocation6], %s148
          %s150 = sand.u32 %s66, 1
          %s151 = smul.addr %s150, 32
          %s152 = scalar_lea.vmem [#allocation5], %s151
          %s153 = smul.u32 4, %s22
          %155 = vsyncadd %s149, 0
          %s156 = smul.addr %s21, 4
          %s157 = sadd.s32 %s153, %s156
          %s158 = smul.addr %s157, 8
          %s159 = scalar_lea.hbm %s1, %s158
          %s160 = sshll.u32 %s159, 4
          %s161 = int_to_ptr.hbm [resolvable:$true] %s160
          %s162 = sshll.u32 %s152, 4
          %s163 = int_to_ptr.vmem [resolvable:$true] %s162
          %168 = dma.hbm_to_vmem [thread:$0]  %s161, 512, %s163, %s149, 128, 128, 8
        $region24: #{tpu_custom_call.1} parent=15 // pred_fallthru
          _
      $region16: #{tpu_custom_call.1} parent=5 // pred_fallthru
        _
      %p169 = scmp.le.s32.totalorder 1, %s14
      %p170 = scmp.lt.s32.totalorder %s14, 5
      %p171 = pnand %p169, %p170
      %p172 = pneg %p171
      // Predicated region
      $region25: #{tpu_custom_call.1} parent=5 // pred_check
        _
      $region26: #{tpu_custom_call.1} parent=5 // pred_check_branch
        %174 = sbr.rel (%p171) target = $region28
      $region27: #{tpu_custom_call.1} parent=5 // pred_region
        %s175 = ssub.s32 %s14, 1
        %s176 = sand.u32 %s41, 1
        %s177 = scalar_lea.sflag [#allocation4], %s176
        %s178 = sand.u32 %s41, 1
        %s179 = scalar_lea.vmem [#allocation3], %s178
        // Predicated region
        $region29: #{tpu_custom_call.1} parent=27 // pred_check
          %p180 = pneg %p54
        $region30: #{tpu_custom_call.1} parent=27 // pred_check_branch
          %182 = sbr.rel (%p180) target = $region32
        $region31: #{tpu_custom_call.1} parent=27 // pred_region
          %184 = dma.done %s177, 16
        $region32: #{tpu_custom_call.1} parent=27 // pred_fallthru
          _
        %s185 = sand.u32 %s69, 1
        %s186 = scalar_lea.sflag [#allocation6], %s185
        %s187 = sand.u32 %s69, 1
        %s188 = smul.addr %s187, 32
        %s189 = scalar_lea.vmem [#allocation5], %s188
        // Predicated region
        $region33: #{tpu_custom_call.1} parent=27 // pred_check
          %p190 = pneg %p82
        $region34: #{tpu_custom_call.1} parent=27 // pred_check_branch
          %192 = sbr.rel (%p190) target = $region36
        $region35: #{tpu_custom_call.1} parent=27 // pred_region
          %194 = dma.done %s186, 512
        $region36: #{tpu_custom_call.1} parent=27 // pred_fallthru
          _
        %s195 = sand.u32 %s41, 1
        %s196 = scalar_lea.sflag [#allocation4], %s195
        %s197 = sand.u32 %s41, 1
        %s198 = scalar_lea.vmem [#allocation3], %s197
        %p199 = pneg %p54
        %p200 = pneg %p51
        %s201 = sand.u32 %s69, 1
        %s202 = scalar_lea.sflag [#allocation6], %s201
        %s203 = sand.u32 %s69, 1
        %s204 = smul.addr %s203, 32
        %s205 = scalar_lea.vmem [#allocation5], %s204
        %p206 = pneg %p82
        %p207 = pneg %p79
        %p208 = pneg %p108
        %p209 = pneg %p105
        %p210 = scmp.lt.s32.totalorder %s23, 3
        %s211 = scalar_select %p210, %s23, 3
        %s212 = scalar_lea.vmem %s2, %s211
        %s213 = smul.u32 4, %s24
        %p214 = scmp.lt.s32.totalorder %s23, 3
        %s215 = scalar_select %p214, %s23, 3
        %s216 = scalar_lea.vmem %s2, %s215
        %p217 = scmp.eq.s32.totalorder %s24, 0
        // Predicated region
        $region37: #{tpu_custom_call.1} parent=27 // pred_check
          %p218 = pneg %p217
        $region38: #{tpu_custom_call.1} parent=27 // pred_check_branch
          %220 = sbr.rel (%p218) target = $region40
        $region39: #{tpu_custom_call.1} parent=27 // pred_region
          %vm221 = vcmask 253952
          %222 = vst.msk [vmem:[#allocation2] sm:$0x1] %vm221, 0.0
        $region40: #{tpu_custom_call.1} parent=27 // pred_fallthru
          _
        %v223 = vld [vmem:[#allocation2] sm:$0x1]
        %v224 = vld [vmem:[%s179] sm:$0x1]
        %v225 = vld [vmem:[%s189] sm:$0xff]
        %v226 = vld [vmem:[%s189 + $0x8] sm:$0xff]
        %v227 = vld [vmem:[%s189 + $0x10] sm:$0xff]
        %v228 = vld [vmem:[%s189 + $0x18] sm:$0xff]
        %vm229 = vcmask 261120
        %v231 = vsel %vm229, %v224, 0
        %233 = vmatpush.msra.mxu0 0.0
        %234 = vmatpush.msra.mxu0 0.0
        %235 = vmatpush.msra.mxu0 0.0
        %236 = vmatpush.msra.mxu0 0.0
        %237 = vmatpush.msra.mxu0 0.0
        %238 = vmatpush.msra.mxu0 0.0
        %239 = vmatpush.msra.mxu0 0.0
        %240 = vmatpush.msra.mxu0 0.0
        %241 = vmatpush.msra.mxu0 0.0
        %242 = vmatpush.msra.mxu0 0.0
        %243 = vmatpush.msra.mxu0 0.0
        %244 = vmatpush.msra.mxu0 0.0
        %v245 = vand.u32 %v228, 4294901760
        %246 = vmatpush.msra.mxu0 %v245
        %v247 = vand.u32 %v227, 4294901760
        %248 = vmatpush.msra.mxu0 %v247
        %v249 = vand.u32 %v226, 4294901760
        %250 = vmatpush.msra.mxu0 %v249
        %v251 = vand.u32 %v225, 4294901760
        %252 = vmatpush.msra.mxu0 %v251
        %v253 = vand.u32 %v231, 4294901760
        %v254 = vsub.f32 %v231, %v253
        %v255 = vand.u32 %v254, 4294901760
        %v256 = vsub.f32 %v254, %v255
        %v257 = vand.u32 %v256, 4294901760
        %258 = vmatmul.f32.gmra.mxu0 %v257
        %v259 = vpop.f32.mrf.mxu0
        %v260 = vadd.f32 0.0, %v259
        %261 = vdwg.mxu0
        %262 = vmatpush.msra.mxu0 0.0
        %263 = vmatpush.msra.mxu0 0.0
        %264 = vmatpush.msra.mxu0 0.0
        %265 = vmatpush.msra.mxu0 0.0
        %266 = vmatpush.msra.mxu0 0.0
        %267 = vmatpush.msra.mxu0 0.0
        %268 = vmatpush.msra.mxu0 0.0
        %269 = vmatpush.msra.mxu0 0.0
        %270 = vmatpush.msra.mxu0 0.0
        %271 = vmatpush.msra.mxu0 0.0
        %272 = vmatpush.msra.mxu0 0.0
        %273 = vmatpush.msra.mxu0 0.0
        %v274 = vand.u32 %v228, 4294901760
        %v275 = vsub.f32 %v228, %v274
        %v276 = vand.u32 %v275, 4294901760
        %v277 = vsub.f32 %v275, %v276
        %v278 = vand.u32 %v277, 4294901760
        %279 = vmatpush.msra.mxu0 %v278
        %v280 = vand.u32 %v227, 4294901760
        %v281 = vsub.f32 %v227, %v280
        %v282 = vand.u32 %v281, 4294901760
        %v283 = vsub.f32 %v281, %v282
        %v284 = vand.u32 %v283, 4294901760
        %285 = vmatpush.msra.mxu0 %v284
        %v286 = vand.u32 %v226, 4294901760
        %v287 = vsub.f32 %v226, %v286
        %v288 = vand.u32 %v287, 4294901760
        %v289 = vsub.f32 %v287, %v288
        %v290 = vand.u32 %v289, 4294901760
        %291 = vmatpush.msra.mxu0 %v290
        %v292 = vand.u32 %v225, 4294901760
        %v293 = vsub.f32 %v225, %v292
        %v294 = vand.u32 %v293, 4294901760
        %v295 = vsub.f32 %v293, %v294
        %v296 = vand.u32 %v295, 4294901760
        %297 = vmatpush.msra.mxu0 %v296
        %v298 = vand.u32 %v231, 4294901760
        %299 = vmatmul.f32.gmra.mxu0 %v298
        %v300 = vpop.f32.mrf.mxu0
        %v301 = vadd.f32 %v260, %v300
        %302 = vdwg.mxu0
        %303 = vmatpush.msra.mxu0 0.0
        %304 = vmatpush.msra.mxu0 0.0
        %305 = vmatpush.msra.mxu0 0.0
        %306 = vmatpush.msra.mxu0 0.0
        %307 = vmatpush.msra.mxu0 0.0
        %308 = vmatpush.msra.mxu0 0.0
        %309 = vmatpush.msra.mxu0 0.0
        %310 = vmatpush.msra.mxu0 0.0
        %311 = vmatpush.msra.mxu0 0.0
        %312 = vmatpush.msra.mxu0 0.0
        %313 = vmatpush.msra.mxu0 0.0
        %314 = vmatpush.msra.mxu0 0.0
        %v315 = vand.u32 %v228, 4294901760
        %v316 = vsub.f32 %v228, %v315
        %317 = vmatpush.msra.mxu0 %v316
        %v318 = vand.u32 %v227, 4294901760
        %v319 = vsub.f32 %v227, %v318
        %320 = vmatpush.msra.mxu0 %v319
        %v321 = vand.u32 %v226, 4294901760
        %v322 = vsub.f32 %v226, %v321
        %323 = vmatpush.msra.mxu0 %v322
        %v324 = vand.u32 %v225, 4294901760
        %v325 = vsub.f32 %v225, %v324
        %326 = vmatpush.msra.mxu0 %v325
        %v327 = vand.u32 %v231, 4294901760
        %v328 = vsub.f32 %v231, %v327
        %329 = vmatmul.f32.gmra.mxu0 %v328
        %v330 = vpop.f32.mrf.mxu0
        %v331 = vadd.f32 %v301, %v330
        %332 = vdwg.mxu0
        %333 = vmatpush.msra.mxu0 0.0
        %334 = vmatpush.msra.mxu0 0.0
        %335 = vmatpush.msra.mxu0 0.0
        %336 = vmatpush.msra.mxu0 0.0
        %337 = vmatpush.msra.mxu0 0.0
        %338 = vmatpush.msra.mxu0 0.0
        %339 = vmatpush.msra.mxu0 0.0
        %340 = vmatpush.msra.mxu0 0.0
        %341 = vmatpush.msra.mxu0 0.0
        %342 = vmatpush.msra.mxu0 0.0
        %343 = vmatpush.msra.mxu0 0.0
        %344 = vmatpush.msra.mxu0 0.0
        %v345 = vand.u32 %v228, 4294901760
        %346 = vmatpush.msra.mxu0 %v345
        %v347 = vand.u32 %v227, 4294901760
        %348 = vmatpush.msra.mxu0 %v347
        %v349 = vand.u32 %v226, 4294901760
        %350 = vmatpush.msra.mxu0 %v349
        %v351 = vand.u32 %v225, 4294901760
        %352 = vmatpush.msra.mxu0 %v351
        %v353 = vand.u32 %v231, 4294901760
        %v354 = vsub.f32 %v231, %v353
        %v355 = vand.u32 %v354, 4294901760
        %356 = vmatmul.f32.gmra.mxu0 %v355
        %v357 = vpop.f32.mrf.mxu0
        %v358 = vadd.f32 %v331, %v357
        %359 = vdwg.mxu0
        %360 = vmatpush.msra.mxu0 0.0
        %361 = vmatpush.msra.mxu0 0.0
        %362 = vmatpush.msra.mxu0 0.0
        %363 = vmatpush.msra.mxu0 0.0
        %364 = vmatpush.msra.mxu0 0.0
        %365 = vmatpush.msra.mxu0 0.0
        %366 = vmatpush.msra.mxu0 0.0
        %367 = vmatpush.msra.mxu0 0.0
        %368 = vmatpush.msra.mxu0 0.0
        %369 = vmatpush.msra.mxu0 0.0
        %370 = vmatpush.msra.mxu0 0.0
        %371 = vmatpush.msra.mxu0 0.0
        %v372 = vand.u32 %v228, 4294901760
        %v373 = vsub.f32 %v228, %v372
        %v374 = vand.u32 %v373, 4294901760
        %375 = vmatpush.msra.mxu0 %v374
        %v376 = vand.u32 %v227, 4294901760
        %v377 = vsub.f32 %v227, %v376
        %v378 = vand.u32 %v377, 4294901760
        %379 = vmatpush.msra.mxu0 %v378
        %v380 = vand.u32 %v226, 4294901760
        %v381 = vsub.f32 %v226, %v380
        %v382 = vand.u32 %v381, 4294901760
        %383 = vmatpush.msra.mxu0 %v382
        %v384 = vand.u32 %v225, 4294901760
        %v385 = vsub.f32 %v225, %v384
        %v386 = vand.u32 %v385, 4294901760
        %387 = vmatpush.msra.mxu0 %v386
        %v388 = vand.u32 %v231, 4294901760
        %389 = vmatmul.f32.gmra.mxu0 %v388
        %v390 = vpop.f32.mrf.mxu0
        %v391 = vadd.f32 %v358, %v390
        %392 = vdwg.mxu0
        %393 = vmatpush.msra.mxu0 0.0
        %394 = vmatpush.msra.mxu0 0.0
        %395 = vmatpush.msra.mxu0 0.0
        %396 = vmatpush.msra.mxu0 0.0
        %397 = vmatpush.msra.mxu0 0.0
        %398 = vmatpush.msra.mxu0 0.0
        %399 = vmatpush.msra.mxu0 0.0
        %400 = vmatpush.msra.mxu0 0.0
        %401 = vmatpush.msra.mxu0 0.0
        %402 = vmatpush.msra.mxu0 0.0
        %403 = vmatpush.msra.mxu0 0.0
        %404 = vmatpush.msra.mxu0 0.0
        %v405 = vand.u32 %v228, 4294901760
        %406 = vmatpush.msra.mxu0 %v405
        %v407 = vand.u32 %v227, 4294901760
        %408 = vmatpush.msra.mxu0 %v407
        %v409 = vand.u32 %v226, 4294901760
        %410 = vmatpush.msra.mxu0 %v409
        %v411 = vand.u32 %v225, 4294901760
        %412 = vmatpush.msra.mxu0 %v411
        %v413 = vand.u32 %v231, 4294901760
        %414 = vmatmul.f32.gmra.mxu0 %v413
        %v415 = vpop.f32.mrf.mxu0
        %v416 = vadd.f32 %v391, %v415
        %417 = vdwg.mxu0
        %v418 = vadd.f32 %v223, %v416
        %vm419 = vcmask 253952
        %420 = vst.msk [vmem:[#allocation2] sm:$0x1] %vm419, %v418
        // Predicated region
        $region41: #{tpu_custom_call.1} parent=27 // pred_check
          %p421 = pneg %p217
        $region42: #{tpu_custom_call.1} parent=27 // pred_check_branch
          %423 = sbr.rel (%p421) target = $region44
        $region43: #{tpu_custom_call.1} parent=27 // pred_region
          %v424 = vld [vmem:[#allocation2] sm:$0x1]
          %v425 = vmul.f32 %v424, %v424
          %v426 = vsel %vm419, %v425, 0.0
          %427 = vadd.xlane.f32.xlu0 %v426
          %v428 = vpop.xlane.xlu0 %427
          %v429 = vmul.f32 %v428, 0.0009765625
          %vm430 = vcmask 0
          %431 = vst.msk [vmem:[%s216] sm:$0x1] %vm430, %v429
        $region44: #{tpu_custom_call.1} parent=27 // pred_fallthru
          _
        %p432 = scmp.lt.s32.totalorder %s23, 3
        %s433 = scalar_select %p432, %s23, 3
        %s434 = scalar_lea.vmem %s2, %s433
        // Predicated region
        $region45: #{tpu_custom_call.1} parent=27 // pred_check
          %p435 = pneg %p105
        $region46: #{tpu_custom_call.1} parent=27 // pred_check_branch
          %437 = sbr.rel (%p435) target = $region48
        $region47: #{tpu_custom_call.1} parent=27 // pred_region
          _
        $region48: #{tpu_custom_call.1} parent=27 // pred_fallthru
          _
      $region28: #{tpu_custom_call.1} parent=5 // pred_fallthru
        _
      %p438 = scmp.le.s32.totalorder 2, %s14
      // Predicated region
      $region49: #{tpu_custom_call.1} parent=5 // pred_check
        %p439 = pneg %p438
      $region50: #{tpu_custom_call.1} parent=5 // pred_check_branch
        %441 = sbr.rel (%p439) target = $region52
      $region51: #{tpu_custom_call.1} parent=5 // pred_region
        %s442 = ssub.s32 %s14, 2
        // Predicated region
        $region53: #{tpu_custom_call.1} parent=51 // pred_check
          %p443 = pneg %p111
        $region54: #{tpu_custom_call.1} parent=51 // pred_check_branch
          %445 = sbr.rel (%p443) target = $region56
        $region55: #{tpu_custom_call.1} parent=51 // pred_region
          %p446 = scmp.lt.s32.totalorder %s25, 3
          %s447 = scalar_select %p446, %s25, 3
          %s448 = scalar_lea.vmem %s2, %s447
        $region56: #{tpu_custom_call.1} parent=51 // pred_fallthru
          _
      $region52: #{tpu_custom_call.1} parent=5 // pred_fallthru
        _
    $region6: #{tpu_custom_call.1} parent=1 // loop_footer
      %s18 = sadd.s32 1, %s14
    $region7: #{tpu_custom_call.1} parent=1 // loop_footer_branch
      %13 = sbr.rel target = $region3
    $region8: #{tpu_custom_call.1} parent=1 // loop_exit
      _
    %449 = vsyncpa [#allocation4], 1
    %s450 = scalar_lea.sflag [#allocation4], 1
    %451 = vsyncpa %s450, 1
    %452 = vsyncpa [#allocation6], 1
    %s453 = scalar_lea.sflag [#allocation6], 1
    %454 = vsyncpa %s453, 1

</llo_original>
